<compile_context>
chip_gen: v5e
topology: v5e:2x2
jax: 0.10.0
libtpu: 0.0.40
codegen_flags: <defaults>
</compile_context>

<pallas_src>
import functools
import math

import jax
import jax.numpy as jnp
from jax import lax
from jax.experimental import pallas as pl
from jax.experimental.pallas import tpu as pltpu


def _adj_kernel(emb_q_ref, emb_k_ref, wq_ref, bq_ref, wk_ref, bk_ref, o_ref,
                *, temperature):
    # emb_q_ref: (tn, D)  query rows produced this step
    # emb_k_ref: (N, D)   full embedding for this batch element (keys)
    # wq_ref/wk_ref: (D, D)  pre-transposed so q = emb @ wq + bq
    # bq_ref/bk_ref: (1, D)
    # o_ref: (tn, N)
    q = jnp.dot(emb_q_ref[...], wq_ref[...],
                preferred_element_type=jnp.float32) + bq_ref[...]
    k = jnp.dot(emb_k_ref[...], wk_ref[...],
                preferred_element_type=jnp.float32) + bk_ref[...]

    # scores (tn, N) = q @ k^T  (contract over D)
    s = lax.dot_general(q, k, (((1,), (1,)), ((), ())),
                        preferred_element_type=jnp.float32)
    s = s / temperature

    # Numerically stable row softmax along the key (lane) axis.
    m = jnp.max(s, axis=-1, keepdims=True)
    p = jnp.exp(s - m)
    denom = jnp.sum(p, axis=-1, keepdims=True)
    o_ref[...] = (p / denom).astype(o_ref.dtype)


def reconstruct_adj(emb, wq, bq, wk, bk, *, row_tile=None):
    """Q-K inner product graph reconstruction (ReconstrucAdjNet.forward).

    emb: (B, N, D); wq, wk: (D, D) PyTorch (out, in) layout; bq, bk: (D,)
    returns A: (B, N, N), row-softmaxed.
    """
    B, N, D = emb.shape
    temperature = float(D) ** 0.25

    # Query-row tile along N. Default = full N (single step per batch element);
    # for large N pick a multiple of 8 that divides N to bound VMEM.
    tn = N if row_tile is None else row_tile
    assert N % tn == 0, "row_tile must divide N"

    wq_t = wq.T                 # (D, D): q = emb @ wq_t + bq
    wk_t = wk.T
    bq2 = bq.reshape(1, D)
    bk2 = bk.reshape(1, D)

    grid = (B, N // tn)

    # Rough per-step VMEM need: double-buffered emb blocks + resident W/b +
    # double-buffered output block + f32 intermediates (q, k, scores).
    f32 = 4
    need = f32 * (2 * (tn * D + N * D)
                  + 2 * (D * D + D)
                  + 2 * tn * N
                  + tn * D + N * D + tn * N)
    vmem_limit = int(min(max(2 * need, 32 * 1024 * 1024), 48 * 1024 * 1024))

    cost = pl.CostEstimate(
        flops=2 * B * (N * D * D                      # q projection
                       + (N // tn) * N * D * D        # k projection (per row tile)
                       + N * N * D),                  # q @ k^T
        transcendentals=B * N * N,                    # exp in softmax
        bytes_accessed=(2 * emb.size * emb.dtype.itemsize   # emb read as Q and K
                        + 2 * (D * D + D) * f32             # weights + biases
                        + B * N * N * f32),                  # output A
    )

    out = pl.pallas_call(
        functools.partial(_adj_kernel, temperature=temperature),
        out_shape=jax.ShapeDtypeStruct((B, N, N), jnp.float32),
        grid_spec=pltpu.PrefetchScalarGridSpec(
            num_scalar_prefetch=0,
            grid=grid,
            in_specs=[
                pl.BlockSpec((None, tn, D), lambda b, j: (b, j, 0)),  # emb (q rows)
                pl.BlockSpec((None, N, D), lambda b, j: (b, 0, 0)),   # emb (all keys)
                pl.BlockSpec((D, D), lambda b, j: (0, 0)),            # Wq^T (resident)
                pl.BlockSpec((1, D), lambda b, j: (0, 0)),            # bq
                pl.BlockSpec((D, D), lambda b, j: (0, 0)),            # Wk^T (resident)
                pl.BlockSpec((1, D), lambda b, j: (0, 0)),            # bk
            ],
            out_specs=pl.BlockSpec((None, tn, N), lambda b, j: (b, j, 0)),
        ),
        compiler_params=pltpu.CompilerParams(
            dimension_semantics=("parallel", "parallel"),
            vmem_limit_bytes=vmem_limit,
        ),
        cost_estimate=cost,
    )(emb, emb, wq_t, bq2, wk_t, bk2)
    return out


def init_linear(key, in_dim, out_dim, dtype=jnp.float32):
    """Mirror nn.Linear default init: kaiming_uniform(a=sqrt(5)) + uniform bias."""
    kw, kb = jax.random.split(key)
    bound = 1.0 / math.sqrt(in_dim)   # sqrt(6 / ((1+5)*fan_in)) == 1/sqrt(fan_in)
    w = jax.random.uniform(kw, (out_dim, in_dim), dtype, minval=-bound, maxval=bound)
    b = jax.random.uniform(kb, (out_dim,), dtype, minval=-bound, maxval=bound)
    return w, b


if __name__ == "__main__":
    key = jax.random.PRNGKey(0)
    ke, kq, kk = jax.random.split(key, 3)

    B, N, D = 2, 8, 32   # batch, nodes/seq, hidden (indim)
    emb = jax.random.normal(ke, (B, N, D), jnp.float32)
    wq, bq = init_linear(kq, D, D)
    wk, bk = init_linear(kk, D, D)

    A = reconstruct_adj(emb, wq, bq, wk, bk)
    A = jax.block_until_ready(A)

    # Pure-JAX reference of ReconstrucAdjNet.forward
    temperature = float(D) ** 0.25
    q_ref = emb @ wq.T + bq
    k_ref = emb @ wk.T + bk
    s_ref = jnp.einsum("bik,bjk->bij", q_ref, k_ref) / temperature
    A_ref = jax.nn.softmax(s_ref, axis=-1)

    assert A.shape == (B, N, N)
    assert jnp.allclose(A, A_ref, atol=1e-5, rtol=1e-5)
    assert jnp.allclose(A.sum(-1), jnp.ones((B, N)), atol=1e-5)  # rows sum to 1

    print("KERNEL_OK")
</pallas_src>

<mosaic_0001>
module attributes {stable_mosaic.version = 11 : i64} {
  func.func @_adj_kernel(%arg0: i32, %arg1: i32, %arg2: memref<1x8x32xf32, #tpu.memory_space<vmem>>, %arg3: memref<1x8x32xf32, #tpu.memory_space<vmem>>, %arg4: memref<32x32xf32, #tpu.memory_space<vmem>>, %arg5: memref<1x32xf32, #tpu.memory_space<vmem>>, %arg6: memref<32x32xf32, #tpu.memory_space<vmem>>, %arg7: memref<1x32xf32, #tpu.memory_space<vmem>>, %arg8: memref<1x8x8xf32, #tpu.memory_space<vmem>>) attributes {dimension_semantics = [#tpu.dimension_semantics<parallel>, #tpu.dimension_semantics<parallel>], iteration_bounds = array<i64: 2, 1>, scalar_prefetch = 0 : i64, scratch_operands = 0 : i64, tpu.core_type = #tpu.core_type<tc>, window_params = [{transform_indices = @transform_0, window_bounds = array<i64: 1, 8, 32>}, {transform_indices = @transform_1, window_bounds = array<i64: 1, 8, 32>}, {pipeline_mode = #tpu.pipeline_mode<synchronous>, transform_indices = @transform_2, window_bounds = array<i64: 32, 32>}, {pipeline_mode = #tpu.pipeline_mode<synchronous>, transform_indices = @transform_3, window_bounds = array<i64: 1, 32>}, {pipeline_mode = #tpu.pipeline_mode<synchronous>, transform_indices = @transform_4, window_bounds = array<i64: 32, 32>}, {pipeline_mode = #tpu.pipeline_mode<synchronous>, transform_indices = @transform_5, window_bounds = array<i64: 1, 32>}, {transform_indices = @transform_6, window_bounds = array<i64: 1, 8, 8>}]} {
    %c0 = arith.constant 0 : index
    %c0_0 = arith.constant 0 : index
    %c0_1 = arith.constant 0 : index
    %0 = vector.load %arg2[%c0, %c0_0, %c0_1] : memref<1x8x32xf32, #tpu.memory_space<vmem>>, vector<1x8x32xf32>
    %1 = vector.shape_cast %0 : vector<1x8x32xf32> to vector<8x32xf32>
    %c0_2 = arith.constant 0 : index
    %c0_3 = arith.constant 0 : index
    %2 = vector.load %arg4[%c0_2, %c0_3] : memref<32x32xf32, #tpu.memory_space<vmem>>, vector<32x32xf32>
    %cst = arith.constant dense<0.000000e+00> : vector<8x32xf32>
    %3 = tpu.matmul %1, %2, %cst {dimension_numbers = #tpu.dot_dimension_numbers<[1], [0], [0], [1], [0, 0, 1, 1], [], []>} : vector<8x32xf32>, vector<32x32xf32>, vector<8x32xf32> -> vector<8x32xf32>
    %c0_4 = arith.constant 0 : index
    %c0_5 = arith.constant 0 : index
    %4 = vector.load %arg5[%c0_4, %c0_5] : memref<1x32xf32, #tpu.memory_space<vmem>>, vector<1x32xf32>
    %5 = vector.broadcast %4 : vector<1x32xf32> to vector<8x32xf32>
    %6 = arith.addf %3, %5 : vector<8x32xf32>
    %c0_6 = arith.constant 0 : index
    %c0_7 = arith.constant 0 : index
    %c0_8 = arith.constant 0 : index
    %7 = vector.load %arg3[%c0_6, %c0_7, %c0_8] : memref<1x8x32xf32, #tpu.memory_space<vmem>>, vector<1x8x32xf32>
    %8 = vector.shape_cast %7 : vector<1x8x32xf32> to vector<8x32xf32>
    %c0_9 = arith.constant 0 : index
    %c0_10 = arith.constant 0 : index
    %9 = vector.load %arg6[%c0_9, %c0_10] : memref<32x32xf32, #tpu.memory_space<vmem>>, vector<32x32xf32>
    %cst_11 = arith.constant dense<0.000000e+00> : vector<8x32xf32>
    %10 = tpu.matmul %8, %9, %cst_11 {dimension_numbers = #tpu.dot_dimension_numbers<[1], [0], [0], [1], [0, 0, 1, 1], [], []>} : vector<8x32xf32>, vector<32x32xf32>, vector<8x32xf32> -> vector<8x32xf32>
    %c0_12 = arith.constant 0 : index
    %c0_13 = arith.constant 0 : index
    %11 = vector.load %arg7[%c0_12, %c0_13] : memref<1x32xf32, #tpu.memory_space<vmem>>, vector<1x32xf32>
    %12 = vector.broadcast %11 : vector<1x32xf32> to vector<8x32xf32>
    %13 = arith.addf %10, %12 : vector<8x32xf32>
    %cst_14 = arith.constant dense<0.000000e+00> : vector<8x8xf32>
    %14 = tpu.matmul %6, %13, %cst_14 {dimension_numbers = #tpu.dot_dimension_numbers<[1], [1], [0], [0], [0, 0, 1, 0], [], []>} : vector<8x32xf32>, vector<8x32xf32>, vector<8x8xf32> -> vector<8x8xf32>
    %cst_15 = arith.constant 2.37841415 : f32
    %15 = vector.broadcast %cst_15 : f32 to vector<8x8xf32>
    %16 = arith.divf %14, %15 : vector<8x8xf32>
    %cst_16 = arith.constant dense<0xFF800000> : vector<8xf32>
    %17 = vector.multi_reduction <maximumf>, %16, %cst_16 [1] : vector<8x8xf32> to vector<8xf32>
    %18 = vector.shape_cast %17 : vector<8xf32> to vector<8x1xf32>
    %19 = vector.broadcast %18 : vector<8x1xf32> to vector<8x8xf32>
    %20 = arith.subf %16, %19 : vector<8x8xf32>
    %21 = math.exp %20 : vector<8x8xf32>
    %cst_17 = arith.constant dense<0.000000e+00> : vector<8xf32>
    %22 = vector.multi_reduction <add>, %21, %cst_17 [1] : vector<8x8xf32> to vector<8xf32>
    %23 = vector.shape_cast %22 : vector<8xf32> to vector<8x1xf32>
    %24 = vector.broadcast %23 : vector<8x1xf32> to vector<8x8xf32>
    %25 = arith.divf %21, %24 : vector<8x8xf32>
    %c0_18 = arith.constant 0 : index
    %c0_19 = arith.constant 0 : index
    %c0_20 = arith.constant 0 : index
    %26 = vector.load %arg8[%c0_18, %c0_19, %c0_20] : memref<1x8x8xf32, #tpu.memory_space<vmem>>, vector<1x8x8xf32>
    %27 = vector.shape_cast %26 : vector<1x8x8xf32> to vector<8x8xf32>
    %28 = vector.shape_cast %25 : vector<8x8xf32> to vector<1x8x8xf32>
    tpu.vector_store %arg8[%c0_18, %c0_19, %c0_20], %28 {strides = array<i32>} : memref<1x8x8xf32, #tpu.memory_space<vmem>>, vector<1x8x8xf32>,
    return
  }
  func.func @transform_0(%arg0: i32, %arg1: i32) -> (i32, i32, i32) {
    %c0_i32 = arith.constant 0 : i32
    %c0_i32_0 = arith.constant 0 : i32
    return %arg0, %arg1, %c0_i32 : i32, i32, i32
  }
  func.func @transform_1(%arg0: i32, %arg1: i32) -> (i32, i32, i32) {
    %c0_i32 = arith.constant 0 : i32
    %c0_i32_0 = arith.constant 0 : i32
    %c0_i32_1 = arith.constant 0 : i32
    return %arg0, %c0_i32, %c0_i32_0 : i32, i32, i32
  }
  func.func @transform_2(%arg0: i32, %arg1: i32) -> (i32, i32) {
    %c0_i32 = arith.constant 0 : i32
    %c0_i32_0 = arith.constant 0 : i32
    %c0_i32_1 = arith.constant 0 : i32
    return %c0_i32, %c0_i32_0 : i32, i32
  }
  func.func @transform_3(%arg0: i32, %arg1: i32) -> (i32, i32) {
    %c0_i32 = arith.constant 0 : i32
    %c0_i32_0 = arith.constant 0 : i32
    %c0_i32_1 = arith.constant 0 : i32
    return %c0_i32, %c0_i32_0 : i32, i32
  }
  func.func @transform_4(%arg0: i32, %arg1: i32) -> (i32, i32) {
    %c0_i32 = arith.constant 0 : i32
    %c0_i32_0 = arith.constant 0 : i32
    %c0_i32_1 = arith.constant 0 : i32
    return %c0_i32, %c0_i32_0 : i32, i32
  }
  func.func @transform_5(%arg0: i32, %arg1: i32) -> (i32, i32) {
    %c0_i32 = arith.constant 0 : i32
    %c0_i32_0 = arith.constant 0 : i32
    %c0_i32_1 = arith.constant 0 : i32
    return %c0_i32, %c0_i32_0 : i32, i32
  }
  func.func @transform_6(%arg0: i32, %arg1: i32) -> (i32, i32, i32) {
    %c0_i32 = arith.constant 0 : i32
    %c0_i32_0 = arith.constant 0 : i32
    return %arg0, %arg1, %c0_i32 : i32, i32, i32
  }
}

</mosaic_0001>

<llo_original>
// kernel: tpu_custom_call.1
$region0: #{tpu_custom_call.1}
  #allocation0 [shape = 'u32[]', space=smem, size = 0x4, offset = 0x4, fixed_abs, tag = 'smem constant byte address 0x4 - core index']
  #allocation1 [shape = 'u32[72,128]{1,0:T(1,128)}', space=vmem, size = 0x9000, scoped, tag = 'internal scratch']
  %s0 = inlined_call_operand.hbm [shape: f32[2,8,32], index: 0, kind: input, shape index: {}]
  %s1 = inlined_call_operand.hbm [shape: f32[2,8,32], index: 1, kind: input, shape index: {}]
  %s2 = inlined_call_operand.hbm [shape: f32[32,32], index: 2, kind: input, shape index: {}]
  %s3 = inlined_call_operand.vmem [shape: f32[1,32], index: 3, kind: input, shape index: {}]
  %s4 = inlined_call_operand.hbm [shape: f32[32,32], index: 4, kind: input, shape index: {}]
  %s5 = inlined_call_operand.vmem [shape: f32[1,32], index: 5, kind: input, shape index: {}]
  %s6 = inlined_call_operand.hbm [shape: f32[2,8,8], index: 6, kind: output, shape index: {}]
  %s7 = sld [smem:[#allocation0]]
  $region73: #{tpu_custom_call.1} parent=0
    _
  %s9 = ssub.s32 1, %s7
  %s10 = scalar_select 0, %s9, %s7
  $region1: #{tpu_custom_call.1} parent=0
    #allocation2 [shape = 'u8[8192]{0}', space=vmem, size = 0x2000, scoped, tag = 'input window, operand 0']
    #allocation3 [shape = 's32[2]{0}', space=sflag, size = 0x8, scoped, tag = 'scoped memory for tpu_custom_call.1']
    #allocation4 [shape = 's32[2]{0}', space=sflag, size = 0x8, scoped, tag = 'scoped memory for tpu_custom_call.1']
    #allocation5 [shape = 'u8[8192]{0}', space=vmem, size = 0x2000, scoped, tag = 'input window, operand 1']
    #allocation6 [shape = 's32[2]{0}', space=sflag, size = 0x8, scoped, tag = 'scoped memory for tpu_custom_call.1']
    #allocation7 [shape = 'u8[16384]{0}', space=vmem, size = 0x4000, scoped, tag = 'input window, operand 2, single buffered']
    #allocation8 [shape = 'u8[16384]{0}', space=vmem, size = 0x4000, scoped, tag = 'input window, operand 4, single buffered']
    #allocation9 [shape = 's32[1]{0}', space=sflag, size = 0x4, scoped, tag = 'scoped memory for tpu_custom_call.1']
    #allocation10 [shape = 'u8[8192]{0}', space=vmem, size = 0x2000, scoped, tag = 'output window, operand 0']
    %11 = vsyncpa [#allocation3], 0
    %s12 = scalar_lea.sflag [#allocation3], 1
    %13 = vsyncpa %s12, 0
    %14 = vsyncpa [#allocation6], 0
    %s15 = scalar_lea.sflag [#allocation6], 1
    %16 = vsyncpa %s15, 0
    %17 = vsyncpa [#allocation9], 0
    %18 = vsyncpa [#allocation4], 0
    %s19 = scalar_lea.sflag [#allocation4], 1
    %20 = vsyncpa %s19, 0
    loop: start=0, step=1, limit=4
    $region2: #{tpu_custom_call.1} parent=1 // loop_pre_header
      _
    $region3: #{tpu_custom_call.1} parent=1 // loop_header
      %s22 = sphi 0, %s26
      %p23 = scmp.ge.s32.totalorder %s22, 4
      %s29 = sphi 0, %s41
      %s30 = sphi 0, %s37
      %s31 = sphi 0, %s29
      %s32 = sphi 0, %s30
      %s33 = sphi 0, %s31
      %s34 = sphi 0, %s32
      %s46 = sphi 0, %s48
      %s49 = sphi 0, %s46
      %s50 = sphi 0, %s49
      %s66 = sphi 0, %s50
      %s72 = sphi 0, %s74
      %s75 = sphi 0, %s72
      %s76 = sphi 0, %s75
      %s92 = sphi 0, %s76
      %s96 = sphi 0, %s96
      %s98 = sphi 0, %s96
      %s99 = sphi 0, %s98
      %s113 = sphi 0, %s99
      %s117 = sphi 0, %s117
      %s119 = sphi 0, %s117
      %s120 = sphi 0, %s119
      %s134 = sphi 0, %s120
      %s138 = sphi 0, %s138
      %s140 = sphi 0, %s138
      %s141 = sphi 0, %s140
      %s155 = sphi 0, %s141
      %s159 = sphi 0, %s159
      %s161 = sphi 0, %s159
      %s162 = sphi 0, %s161
      %s176 = sphi 0, %s162
      %s184 = sphi 0, %s186
      %s187 = sphi 0, %s184
      %s188 = sphi 0, %s187
      %s204 = sphi 0, %s188
    $region4: #{tpu_custom_call.1} parent=1 // loop_header_branch
      %25 = sbr.rel (%p23) target = $region8
    $region5: #{tpu_custom_call.1} parent=1 // loop_body
      %s27 = ssub.s32 %s22, 1
      %s28 = ssub.s32 %s22, 2
      %s35 = sadd.s32 1, %s30
      %p36 = scmp.ge.s32.totalorder %s35, 1
      %s37 = scalar_select %p36, 0, %s35
      %s38 = sadd.s32 1, %s29
      %s39 = scalar_select %p36, %s38, %s29
      %p40 = scmp.ge.s32.totalorder %s39, 2
      %s41 = scalar_select %p40, 0, %s39
      %s42 = ssub.s32 %s29, %s41
      %s43 = ssub.s32 %s30, %s37
      %s44 = sor.u32 %s42, %s43
      %p45 = scmp.eq.s32.totalorder %s44, 0
      %s47 = sadd.s32 %s46, 1
      %s48 = scalar_select %p45, %s46, %s47
      %p51 = pneg %p45
      %p52 = scmp.eq.s32.totalorder %s22, 1
      %p53 = por %p51, %p52
      %p54 = scmp.ne.s32.totalorder %s46, %s49
      %p55 = scmp.eq.s32.totalorder %s22, 0
      %p56 = por %p54, %p55
      %p57 = scmp.ne.s32.totalorder %s46, %s49
      %p58 = scmp.eq.s32.totalorder %s27, 1
      %p59 = por %p57, %p58
      %p60 = scmp.ne.s32.totalorder %s49, %s50
      %p61 = scmp.eq.s32.totalorder %s27, 0
      %p62 = por %p60, %p61
      %p63 = scmp.ne.s32.totalorder %s49, %s50
      %p64 = scmp.eq.s32.totalorder %s28, 1
      %p65 = por %p63, %p64
      %p67 = scmp.ne.s32.totalorder %s50, %s66
      %p68 = scmp.eq.s32.totalorder %s28, 0
      %p69 = por %p67, %p68
      %s70 = ssub.s32 %s29, %s41
      %p71 = scmp.eq.s32.totalorder %s70, 0
      %s73 = sadd.s32 %s72, 1
      %s74 = scalar_select %p71, %s72, %s73
      %p77 = pneg %p71
      %p78 = scmp.eq.s32.totalorder %s22, 1
      %p79 = por %p77, %p78
      %p80 = scmp.ne.s32.totalorder %s72, %s75
      %p81 = scmp.eq.s32.totalorder %s22, 0
      %p82 = por %p80, %p81
      %p83 = scmp.ne.s32.totalorder %s72, %s75
      %p84 = scmp.eq.s32.totalorder %s27, 1
      %p85 = por %p83, %p84
      %p86 = scmp.ne.s32.totalorder %s75, %s76
      %p87 = scmp.eq.s32.totalorder %s27, 0
      %p88 = por %p86, %p87
      %p89 = scmp.ne.s32.totalorder %s75, %s76
      %p90 = scmp.eq.s32.totalorder %s28, 1
      %p91 = por %p89, %p90
      %p93 = scmp.ne.s32.totalorder %s76, %s92
      %p94 = scmp.eq.s32.totalorder %s28, 0
      %p95 = por %p93, %p94
      %s97 = sadd.s32 %s96, 1
      %p100 = scmp.eq.s32.totalorder %s22, 1
      %p101 = scmp.ne.s32.totalorder %s96, %s98
      %p102 = scmp.eq.s32.totalorder %s22, 0
      %p103 = por %p101, %p102
      %p104 = scmp.ne.s32.totalorder %s96, %s98
      %p105 = scmp.eq.s32.totalorder %s27, 1
      %p106 = por %p104, %p105
      %p107 = scmp.ne.s32.totalorder %s98, %s99
      %p108 = scmp.eq.s32.totalorder %s27, 0
      %p109 = por %p107, %p108
      %p110 = scmp.ne.s32.totalorder %s98, %s99
      %p111 = scmp.eq.s32.totalorder %s28, 1
      %p112 = por %p110, %p111
      %p114 = scmp.ne.s32.totalorder %s99, %s113
      %p115 = scmp.eq.s32.totalorder %s28, 0
      %p116 = por %p114, %p115
      %s118 = sadd.s32 %s117, 1
      %p121 = scmp.eq.s32.totalorder %s22, 1
      %p122 = scmp.ne.s32.totalorder %s117, %s119
      %p123 = scmp.eq.s32.totalorder %s22, 0
      %p124 = por %p122, %p123
      %p125 = scmp.ne.s32.totalorder %s117, %s119
      %p126 = scmp.eq.s32.totalorder %s27, 1
      %p127 = por %p125, %p126
      %p128 = scmp.ne.s32.totalorder %s119, %s120
      %p129 = scmp.eq.s32.totalorder %s27, 0
      %p130 = por %p128, %p129
      %p131 = scmp.ne.s32.totalorder %s119, %s120
      %p132 = scmp.eq.s32.totalorder %s28, 1
      %p133 = por %p131, %p132
      %p135 = scmp.ne.s32.totalorder %s120, %s134
      %p136 = scmp.eq.s32.totalorder %s28, 0
      %p137 = por %p135, %p136
      %s139 = sadd.s32 %s138, 1
      %p142 = scmp.eq.s32.totalorder %s22, 1
      %p143 = scmp.ne.s32.totalorder %s138, %s140
      %p144 = scmp.eq.s32.totalorder %s22, 0
      %p145 = por %p143, %p144
      %p146 = scmp.ne.s32.totalorder %s138, %s140
      %p147 = scmp.eq.s32.totalorder %s27, 1
      %p148 = por %p146, %p147
      %p149 = scmp.ne.s32.totalorder %s140, %s141
      %p150 = scmp.eq.s32.totalorder %s27, 0
      %p151 = por %p149, %p150
      %p152 = scmp.ne.s32.totalorder %s140, %s141
      %p153 = scmp.eq.s32.totalorder %s28, 1
      %p154 = por %p152, %p153
      %p156 = scmp.ne.s32.totalorder %s141, %s155
      %p157 = scmp.eq.s32.totalorder %s28, 0
      %p158 = por %p156, %p157
      %s160 = sadd.s32 %s159, 1
      %p163 = scmp.eq.s32.totalorder %s22, 1
      %p164 = scmp.ne.s32.totalorder %s159, %s161
      %p165 = scmp.eq.s32.totalorder %s22, 0
      %p166 = por %p164, %p165
      %p167 = scmp.ne.s32.totalorder %s159, %s161
      %p168 = scmp.eq.s32.totalorder %s27, 1
      %p169 = por %p167, %p168
      %p170 = scmp.ne.s32.totalorder %s161, %s162
      %p171 = scmp.eq.s32.totalorder %s27, 0
      %p172 = por %p170, %p171
      %p173 = scmp.ne.s32.totalorder %s161, %s162
      %p174 = scmp.eq.s32.totalorder %s28, 1
      %p175 = por %p173, %p174
      %p177 = scmp.ne.s32.totalorder %s162, %s176
      %p178 = scmp.eq.s32.totalorder %s28, 0
      %p179 = por %p177, %p178
      %s180 = ssub.s32 %s29, %s41
      %s181 = ssub.s32 %s30, %s37
      %s182 = sor.u32 %s180, %s181
      %p183 = scmp.eq.s32.totalorder %s182, 0
      %s185 = sadd.s32 %s184, 1
      %s186 = scalar_select %p183, %s184, %s185
      %p189 = pneg %p183
      %p190 = scmp.eq.s32.totalorder %s22, 1
      %p191 = por %p189, %p190
      %p192 = scmp.ne.s32.totalorder %s184, %s187
      %p193 = scmp.eq.s32.totalorder %s22, 0
      %p194 = por %p192, %p193
      %p195 = scmp.ne.s32.totalorder %s184, %s187
      %p196 = scmp.eq.s32.totalorder %s27, 1
      %p197 = por %p195, %p196
      %p198 = scmp.ne.s32.totalorder %s187, %s188
      %p199 = scmp.eq.s32.totalorder %s27, 0
      %p200 = por %p198, %p199
      %p201 = scmp.ne.s32.totalorder %s187, %s188
      %p202 = scmp.eq.s32.totalorder %s28, 1
      %p203 = por %p201, %p202
      %p205 = scmp.ne.s32.totalorder %s188, %s204
      %p206 = scmp.eq.s32.totalorder %s28, 0
      %p207 = por %p205, %p206
      %p208 = scmp.le.s32.totalorder 1, %s22
      %p209 = scmp.lt.s32.totalorder %s22, 3
      %p210 = pnand %p208, %p209
      %p211 = pneg %p210
      // Predicated region
      $region9: #{tpu_custom_call.1} parent=5 // pred_check
        _
      $region10: #{tpu_custom_call.1} parent=5 // pred_check_branch
        %213 = sbr.rel (%p210) target = $region12
      $region11: #{tpu_custom_call.1} parent=5 // pred_region
        %s214 = ssub.s32 %s22, 1
        // Predicated region
        $region13: #{tpu_custom_call.1} parent=11 // pred_check
          %p215 = pneg %p109
        $region14: #{tpu_custom_call.1} parent=11 // pred_check_branch
          %217 = sbr.rel (%p215) target = $region16
        $region15: #{tpu_custom_call.1} parent=11 // pred_region
          %219 = vsyncadd [#allocation6], 0
          %s220 = sshll.u32 %s2, 4
          %s221 = int_to_ptr.hbm [resolvable:$true] %s220
          %s222 = sshll.u32 [#allocation7], 4
          %s223 = int_to_ptr.vmem [resolvable:$true] %s222
          %228 = dma.hbm_to_vmem [thread:$0]  %s221, 512, %s223, [#allocation6], 128, 128, 8
        $region16: #{tpu_custom_call.1} parent=11 // pred_fallthru
          _
        // Predicated region
        $region17: #{tpu_custom_call.1} parent=11 // pred_check
          %p229 = pneg %p130
        $region18: #{tpu_custom_call.1} parent=11 // pred_check_branch
          %231 = sbr.rel (%p229) target = $region20
        $region19: #{tpu_custom_call.1} parent=11 // pred_region
          _
        $region20: #{tpu_custom_call.1} parent=11 // pred_fallthru
          _
        // Predicated region
        $region21: #{tpu_custom_call.1} parent=11 // pred_check
          %p232 = pneg %p151
        $region22: #{tpu_custom_call.1} parent=11 // pred_check_branch
          %234 = sbr.rel (%p232) target = $region24
        $region23: #{tpu_custom_call.1} parent=11 // pred_region
          %236 = vsyncadd [#allocation9], 0
          %s237 = sshll.u32 %s4, 4
          %s238 = int_to_ptr.hbm [resolvable:$true] %s237
          %s239 = sshll.u32 [#allocation8], 4
          %s240 = int_to_ptr.vmem [resolvable:$true] %s239
          %245 = dma.hbm_to_vmem [thread:$0]  %s238, 512, %s240, [#allocation9], 128, 128, 8
        $region24: #{tpu_custom_call.1} parent=11 // pred_fallthru
          _
        // Predicated region
        $region25: #{tpu_custom_call.1} parent=11 // pred_check
          %p246 = pneg %p172
        $region26: #{tpu_custom_call.1} parent=11 // pred_check_branch
          %248 = sbr.rel (%p246) target = $region28
        $region27: #{tpu_custom_call.1} parent=11 // pred_region
          _
        $region28: #{tpu_custom_call.1} parent=11 // pred_fallthru
          _
      $region12: #{tpu_custom_call.1} parent=5 // pred_fallthru
        _
      %p249 = scmp.lt.s32.totalorder %s22, 2
      // Predicated region
      $region29: #{tpu_custom_call.1} parent=5 // pred_check
        %p250 = pneg %p249
      $region30: #{tpu_custom_call.1} parent=5 // pred_check_branch
        %252 = sbr.rel (%p250) target = $region32
      $region31: #{tpu_custom_call.1} parent=5 // pred_region
        // Predicated region
        $region33: #{tpu_custom_call.1} parent=31 // pred_check
          %p253 = pneg %p56
        $region34: #{tpu_custom_call.1} parent=31 // pred_check_branch
          %255 = sbr.rel (%p253) target = $region36
        $region35: #{tpu_custom_call.1} parent=31 // pred_region
          %s256 = sand.u32 %s46, 1
          %s257 = scalar_lea.sflag [#allocation3], %s256
          %s258 = sand.u32 %s46, 1
          %s259 = smul.addr %s258, 8
          %s260 = scalar_lea.vmem [#allocation2], %s259
          %262 = vsyncadd %s257, 0
          %s263 = sadd.s32 %s30, %s29
          %s264 = smul.addr %s263, 8
          %s265 = scalar_lea.hbm %s0, %s264
          %s267 = sshll.u32 %s265, 4
          %s268 = int_to_ptr.hbm [resolvable:$true] %s267
          %s269 = sshll.u32 %s260, 4
          %s270 = int_to_ptr.vmem [resolvable:$true] %s269
          %272 = dma.hbm_to_vmem [thread:$0]  %s268, 128, %s270, %s257
        $region36: #{tpu_custom_call.1} parent=31 // pred_fallthru
          _
        // Predicated region
        $region37: #{tpu_custom_call.1} parent=31 // pred_check
          %p273 = pneg %p82
        $region38: #{tpu_custom_call.1} parent=31 // pred_check_branch
          %275 = sbr.rel (%p273) target = $region40
        $region39: #{tpu_custom_call.1} parent=31 // pred_region
          %s276 = sand.u32 %s22, 1
          %s277 = scalar_lea.sflag [#allocation6], %s276
          %s278 = sand.u32 %s72, 1
          %s279 = smul.addr %s278, 8
          %s280 = scalar_lea.vmem [#allocation5], %s279
          %282 = vsyncadd %s277, 0
          %s283 = smul.addr %s29, 8
          %s284 = scalar_lea.hbm %s1, %s283
          %s286 = sshll.u32 %s284, 4
          %s287 = int_to_ptr.hbm [resolvable:$true] %s286
          %s288 = sshll.u32 %s280, 4
          %s289 = int_to_ptr.vmem [resolvable:$true] %s288
          %291 = dma.hbm_to_vmem [thread:$0]  %s287, 128, %s289, %s277
        $region40: #{tpu_custom_call.1} parent=31 // pred_fallthru
          _
      $region32: #{tpu_custom_call.1} parent=5 // pred_fallthru
        _
      %p292 = scmp.le.s32.totalorder 1, %s22
      %p293 = scmp.lt.s32.totalorder %s22, 3
      %p294 = pnand %p292, %p293
      %p295 = pneg %p294
      // Predicated region
      $region41: #{tpu_custom_call.1} parent=5 // pred_check
        _
      $region42: #{tpu_custom_call.1} parent=5 // pred_check_branch
        %297 = sbr.rel (%p294) target = $region44
      $region43: #{tpu_custom_call.1} parent=5 // pred_region
        %s298 = ssub.s32 %s22, 1
        %s299 = sand.u32 %s49, 1
        %s300 = scalar_lea.sflag [#allocation3], %s299
        %s301 = sand.u32 %s49, 1
        %s302 = smul.addr %s301, 8
        %s303 = scalar_lea.vmem [#allocation2], %s302
        // Predicated region
        $region45: #{tpu_custom_call.1} parent=43 // pred_check
          %p304 = pneg %p62
        $region46: #{tpu_custom_call.1} parent=43 // pred_check_branch
          %306 = sbr.rel (%p304) target = $region48
        $region47: #{tpu_custom_call.1} parent=43 // pred_region
          %308 = dma.done %s300, 128
        $region48: #{tpu_custom_call.1} parent=43 // pred_fallthru
          _
        %s309 = sand.u32 %s27, 1
        %s310 = scalar_lea.sflag [#allocation6], %s309
        %s311 = sand.u32 %s75, 1
        %s312 = smul.addr %s311, 8
        %s313 = scalar_lea.vmem [#allocation5], %s312
        // Predicated region
        $region49: #{tpu_custom_call.1} parent=43 // pred_check
          %p314 = pneg %p88
        $region50: #{tpu_custom_call.1} parent=43 // pred_check_branch
          %316 = sbr.rel (%p314) target = $region52
        $region51: #{tpu_custom_call.1} parent=43 // pred_region
          %318 = dma.done %s310, 128
        $region52: #{tpu_custom_call.1} parent=43 // pred_fallthru
          _
        // Predicated region
        $region53: #{tpu_custom_call.1} parent=43 // pred_check
          %p319 = pneg %p109
        $region54: #{tpu_custom_call.1} parent=43 // pred_check_branch
          %321 = sbr.rel (%p319) target = $region56
        $region55: #{tpu_custom_call.1} parent=43 // pred_region
          %323 = dma.done [#allocation6], 512
        $region56: #{tpu_custom_call.1} parent=43 // pred_fallthru
          _
        // Predicated region
        $region57: #{tpu_custom_call.1} parent=43 // pred_check
          %p324 = pneg %p151
        $region58: #{tpu_custom_call.1} parent=43 // pred_check_branch
          %326 = sbr.rel (%p324) target = $region60
        $region59: #{tpu_custom_call.1} parent=43 // pred_region
          %328 = dma.done [#allocation9], 512
        $region60: #{tpu_custom_call.1} parent=43 // pred_fallthru
          _
        %s329 = sand.u32 %s49, 1
        %s330 = scalar_lea.sflag [#allocation3], %s329
        %s331 = sand.u32 %s49, 1
        %s332 = smul.addr %s331, 8
        %s333 = scalar_lea.vmem [#allocation2], %s332
        %p334 = pneg %p62
        %p335 = pneg %p59
        %s336 = sand.u32 %s27, 1
        %s337 = scalar_lea.sflag [#allocation6], %s336
        %s338 = sand.u32 %s75, 1
        %s339 = smul.addr %s338, 8
        %s340 = scalar_lea.vmem [#allocation5], %s339
        %p341 = pneg %p88
        %p342 = pneg %p85
        %p343 = pneg %p109
        %p344 = pneg %p106
        %p345 = pneg %p130
        %p346 = pneg %p127
        %p347 = pneg %p151
        %p348 = pneg %p148
        %p349 = pneg %p172
        %p350 = pneg %p169
        %p351 = pneg %p200
        %p352 = pneg %p197
        %s353 = sand.u32 %s187, 1
        %s354 = scalar_lea.sflag [#allocation4], %s353
        %s355 = sand.u32 %s187, 1
        %s356 = smul.addr %s355, 8
        %s357 = scalar_lea.vmem [#allocation10], %s356
        %v358 = vld [vmem:[%s303] sm:$0xff]
        %v359 = vld [vmem:[#allocation7] sm:$0xff]
        %v360 = vld [vmem:[#allocation7 + $0x8] sm:$0xff]
        %v361 = vld [vmem:[#allocation7 + $0x10] sm:$0xff]
        %v362 = vld [vmem:[#allocation7 + $0x18] sm:$0xff]
        %v363 = vld [vmem:[%s3] sm:$0x1]
        %v365 = vperm.slane %v363, 0
        %vm367 = vcmask 261120
        %v369 = vsel %vm367, %v358, 0
        %371 = vmatpush.msra.mxu0 0.0
        %372 = vmatpush.msra.mxu0 0.0
        %373 = vmatpush.msra.mxu0 0.0
        %374 = vmatpush.msra.mxu0 0.0
        %375 = vmatpush.msra.mxu0 0.0
        %376 = vmatpush.msra.mxu0 0.0
        %377 = vmatpush.msra.mxu0 0.0
        %378 = vmatpush.msra.mxu0 0.0
        %379 = vmatpush.msra.mxu0 0.0
        %380 = vmatpush.msra.mxu0 0.0
        %381 = vmatpush.msra.mxu0 0.0
        %382 = vmatpush.msra.mxu0 0.0
        %383 = vmatpush.msra.mxu0 %v362
        %384 = vmatpush.msra.mxu0 %v361
        %385 = vmatpush.msra.mxu0 %v360
        %386 = vmatpush.msra.mxu0 %v359
        %387 = vmatmul.f32.gmra.mxu0 %v369
        %v388 = vpop.f32.mrf.mxu0
        %v389 = vadd.f32 %v365, %v388
        %390 = vdwg.mxu0
        %v391 = vld [vmem:[%s313] sm:$0xff]
        %v392 = vld [vmem:[#allocation8] sm:$0xff]
        %v393 = vld [vmem:[#allocation8 + $0x8] sm:$0xff]
        %v394 = vld [vmem:[#allocation8 + $0x10] sm:$0xff]
        %v395 = vld [vmem:[#allocation8 + $0x18] sm:$0xff]
        %v396 = vld [vmem:[%s5] sm:$0x1]
        %v398 = vperm.slane %v396, 0
        %v401 = vsel %vm367, %v391, 0
        %403 = vmatpush.msra.mxu0 0.0
        %404 = vmatpush.msra.mxu0 0.0
        %405 = vmatpush.msra.mxu0 0.0
        %406 = vmatpush.msra.mxu0 0.0
        %407 = vmatpush.msra.mxu0 0.0
        %408 = vmatpush.msra.mxu0 0.0
        %409 = vmatpush.msra.mxu0 0.0
        %410 = vmatpush.msra.mxu0 0.0
        %411 = vmatpush.msra.mxu0 0.0
        %412 = vmatpush.msra.mxu0 0.0
        %413 = vmatpush.msra.mxu0 0.0
        %414 = vmatpush.msra.mxu0 0.0
        %415 = vmatpush.msra.mxu0 %v395
        %416 = vmatpush.msra.mxu0 %v394
        %417 = vmatpush.msra.mxu0 %v393
        %418 = vmatpush.msra.mxu0 %v392
        %419 = vmatmul.f32.gmra.mxu0 %v401
        %v420 = vpop.f32.mrf.mxu0
        %v421 = vadd.f32 %v398, %v420
        %422 = vdwg.mxu0
        %v424 = vsel %vm367, %v389, 0
        %v427 = vsel %vm367, %v421, 0
        %429 = vmatpush.xpose.msra.mxu0 0.0
        %430 = vmatpush.xpose.msra.mxu0 0.0
        %431 = vmatpush.xpose.msra.mxu0 0.0
        %432 = vmatpush.xpose.msra.mxu0 0.0
        %433 = vmatpush.xpose.msra.mxu0 0.0
        %434 = vmatpush.xpose.msra.mxu0 0.0
        %435 = vmatpush.xpose.msra.mxu0 0.0
        %436 = vmatpush.xpose.msra.mxu0 0.0
        %437 = vmatpush.xpose.msra.mxu0 0.0
        %438 = vmatpush.xpose.msra.mxu0 0.0
        %439 = vmatpush.xpose.msra.mxu0 0.0
        %440 = vmatpush.xpose.msra.mxu0 0.0
        %441 = vmatpush.xpose.msra.mxu0 0.0
        %442 = vmatpush.xpose.msra.mxu0 0.0
        %443 = vmatpush.xpose.msra.mxu0 0.0
        %444 = vmatpush.xpose.msra.mxu0 %v427
        %445 = vmatmul.f32.gmra.mxu0 %v424
        %v446 = vpop.f32.mrf.mxu0
        %v447 = vadd.f32 0.0, %v446
        %448 = vdwg.mxu0
        %v449 = vrcp.pop 2.3784142
        %v450 = vmul.f32 2.3784142, %v449
        %v451 = vsub.f32 1.0, %v450
        %v452 = vmul.f32 %v449, %v451
        %v453 = vadd.f32 %v449, %v452
        %vm454 = vweird.f32 %v449
        %v455 = vsel %vm454, %v449, %v453
        %v456 = vmul.f32 %v447, %v455
        %vm457 = vcmask 64512
        %v458 = vsel %vm457, %v456, -inf
        %459 = vmax.xlane.f32.xlu0 %v458
        %v460 = vpop.xlane.xlu0 %459
        %v461 = vsub.f32 %v456, %v460
        %v462 = vmul.f32 %v461, 1.442695
        %v463 = vpow.pop %v462
        %v464 = vsel %vm457, %v463, 0.0
        %465 = vadd.xlane.f32.xlu0 %v464
        %v466 = vpop.xlane.xlu0 %465
        %v467 = vrcp.pop %v466
        %v468 = vmul.f32 %v466, %v467
        %v469 = vsub.f32 1.0, %v468
        %v470 = vmul.f32 %v467, %v469
        %v471 = vadd.f32 %v467, %v470
        %vm472 = vweird.f32 %v466
        %vm473 = vweird.f32 %v467
        %vm474 = vmor %vm472, %vm473
        %v475 = vsel %vm474, %v467, %v471
        %v476 = vand.u32 2147483647, %v466
        %vm477 = vcmp.eq.f32.partialorder %v476, 8.507059e+37
        %v478 = vand.u32 %v466, 2147483648
        %v479 = vor.u32 1.1754944e-38, %v478
        %v480 = vsel %vm477, %v479, %v475
        %v481 = vmul.f32 %v463, %v480
        %482 = vst.msk [vmem:[%s357] sm:$0xff] %vm457, %v481
        %s483 = sand.u32 %s187, 1
        %s484 = scalar_lea.sflag [#allocation4], %s483
        %s485 = sand.u32 %s187, 1
        %s486 = smul.addr %s485, 8
        %s487 = scalar_lea.vmem [#allocation10], %s486
        // Predicated region
        $region61: #{tpu_custom_call.1} parent=43 // pred_check
          %p488 = pneg %p197
        $region62: #{tpu_custom_call.1} parent=43 // pred_check_branch
          %490 = sbr.rel (%p488) target = $region64
        $region63: #{tpu_custom_call.1} parent=43 // pred_region
          %492 = vsyncadd %s484, 0
          %s493 = sadd.s32 %s32, %s31
          %s494 = smul.addr %s493, 8
          %s495 = scalar_lea.hbm %s6, %s494
          %s497 = sshll.u32 %s487, 4
          %s498 = int_to_ptr.vmem [resolvable:$true] %s497
          %s499 = sshll.u32 %s495, 4
          %s500 = int_to_ptr.hbm [resolvable:$true] %s499
          %502 = dma.vmem_to_hbm [thread:$0]  %s498, 128, %s500, %s484
        $region64: #{tpu_custom_call.1} parent=43 // pred_fallthru
          _
      $region44: #{tpu_custom_call.1} parent=5 // pred_fallthru
        _
      %p503 = scmp.le.s32.totalorder 2, %s22
      // Predicated region
      $region65: #{tpu_custom_call.1} parent=5 // pred_check
        %p504 = pneg %p503
      $region66: #{tpu_custom_call.1} parent=5 // pred_check_branch
        %506 = sbr.rel (%p504) target = $region68
      $region67: #{tpu_custom_call.1} parent=5 // pred_region
        %s507 = ssub.s32 %s22, 2
        // Predicated region
        $region69: #{tpu_custom_call.1} parent=67 // pred_check
          %p508 = pneg %p203
        $region70: #{tpu_custom_call.1} parent=67 // pred_check_branch
          %510 = sbr.rel (%p508) target = $region72
        $region71: #{tpu_custom_call.1} parent=67 // pred_region
          %s511 = sand.u32 %s188, 1
          %s512 = scalar_lea.sflag [#allocation4], %s511
          %s513 = sand.u32 %s188, 1
          %s514 = smul.addr %s513, 8
          %s515 = scalar_lea.vmem [#allocation10], %s514
          %517 = dma.done %s512, 128
        $region72: #{tpu_custom_call.1} parent=67 // pred_fallthru
          _
      $region68: #{tpu_custom_call.1} parent=5 // pred_fallthru
        _
    $region6: #{tpu_custom_call.1} parent=1 // loop_footer
      %s26 = sadd.s32 1, %s22
    $region7: #{tpu_custom_call.1} parent=1 // loop_footer_branch
      %21 = sbr.rel target = $region3
    $region8: #{tpu_custom_call.1} parent=1 // loop_exit
      _
    %518 = vsyncpa [#allocation3], 1
    %s519 = scalar_lea.sflag [#allocation3], 1
    %520 = vsyncpa %s519, 1
    %521 = vsyncpa [#allocation6], 1
    %s522 = scalar_lea.sflag [#allocation6], 1
    %523 = vsyncpa %s522, 1
    %524 = vsyncpa [#allocation9], 1
    %525 = vsyncpa [#allocation4], 1
    %s526 = scalar_lea.sflag [#allocation4], 1
    %527 = vsyncpa %s526, 1

</llo_original>
